<compile_context>
chip_gen: v7x
topology: tpu7x:2x2x1
jax: 0.10.0
libtpu: 0.0.40
codegen_flags: <defaults>
</compile_context>

<pallas_src>
import functools

import jax
import jax.numpy as jnp
from jax.experimental import pallas as pl
from jax.experimental.pallas import tpu as pltpu


_INV_SQRT2 = 0.70710678118654752440


def _gelu(x, approximate):
    if approximate:
        # tanh approximation lowers to the EUP slot (cheaper on v6e/v7x) but
        # does NOT bit-match PyTorch's default exact-erf nn.GELU.
        return jax.nn.gelu(x, approximate=True)
    # PyTorch nn.GELU default: exact erf formulation (evaluated in f32).
    return 0.5 * x * (1.0 + jax.lax.erf(x * _INV_SQRT2))


# ----------------------------------------------------------------------------
# Kernels
# ----------------------------------------------------------------------------
def _mlp_kernel_resident(x_ref, w1_ref, b1_ref, w2_ref, b2_ref, o_ref, *,
                         approximate):
    # Fast path: whole hidden dim per step, weights resident in VMEM.
    # No accumulator scratch, no init/finalize.
    h = jnp.dot(x_ref[...], w1_ref[...], preferred_element_type=jnp.float32)
    h = _gelu(h + b1_ref[...].astype(jnp.float32), approximate)
    # dropout p=0.0 -> identity.  TODO(synk): PRNG-masked dropout for p > 0.
    # h is cast to the stored weight dtype for the second MXU pass (standard
    # mixed precision; tiny difference vs an all-f32 reference when bf16).
    y = jnp.dot(h.astype(w2_ref.dtype), w2_ref[...],
                preferred_element_type=jnp.float32)
    o_ref[...] = (y + b2_ref[...].astype(jnp.float32)).astype(o_ref.dtype)


def _mlp_kernel_streamed(x_ref, w1_ref, b1_ref, w2_ref, b2_ref, o_ref,
                         acc_ref, *, approximate):
    # Hidden dim streamed in chunks along grid axis 1; f32 accumulator
    # resident across it.  Requires n_k >= 2.
    k = pl.program_id(1)
    last = pl.num_programs(1) - 1

    h = jnp.dot(x_ref[...], w1_ref[...], preferred_element_type=jnp.float32)
    h = _gelu(h + b1_ref[...].astype(jnp.float32), approximate)
    # dropout p=0.0 -> identity.  TODO(synk): PRNG-masked dropout for p > 0.
    contrib = jnp.dot(h.astype(w2_ref.dtype), w2_ref[...],
                      preferred_element_type=jnp.float32)

    @pl.when(k == 0)
    def _init():
        # fc2 bias folded into the first chunk's accumulator write.
        acc_ref[...] = contrib + b2_ref[...].astype(jnp.float32)

    @pl.when(jnp.logical_and(k > 0, k < last))
    def _accumulate():
        acc_ref[...] += contrib

    @pl.when(k == last)
    def _finalize():
        # Fuse the last chunk into the finalize: saves one (tm, Dout) f32
        # store + reload per row tile.
        o_ref[...] = (acc_ref[...] + contrib).astype(o_ref.dtype)


# ----------------------------------------------------------------------------
# Tiling / budget heuristics
# ----------------------------------------------------------------------------
def _round_up(x, m):
    return ((x + m - 1) // m) * m


def _round_down(x, m):
    return (x // m) * m


def _min_sublane(dtype):
    # 8 (f32), 16 (bf16), 32 (int8/fp8).
    return 8 * max(1, 4 // jnp.dtype(dtype).itemsize)


def _vmem_budget():
    # ~80% of physical per-core VMEM: ~51 MiB on v7x, ~102 MiB on v5e/v6e.
    try:
        cap = int(pltpu.get_tpu_info().vmem_capacity_bytes)
    except Exception:
        cap = 64 << 20  # conservative (v7x-sized) fallback
    if cap <= 0:
        cap = 64 << 20
    return int(cap * 0.8)


def _tile_bytes(tm, th, Din, Dout_p, ix, iw, io, wbuf, need_acc):
    b = wbuf * (Din * th + th * Dout_p + th) * iw   # w1 / w2 / b1 blocks
    b += Dout_p * iw                                # b2 (resident)
    b += 2 * tm * Din * ix                          # x tile (double-buffered)
    b += 2 * tm * Dout_p * io                       # out tile (double-buffered)
    b += tm * th * (4 + iw)                         # f32 hidden intermediate + cast
    if need_acc:
        b += tm * Dout_p * 4                        # f32 accumulator scratch
    return b


def _plan_tiles(M, Din, Dh, Dout_p, x_dtype, w_dtype, out_dtype, budget):
    ix = jnp.dtype(x_dtype).itemsize
    iw = jnp.dtype(w_dtype).itemsize
    io = jnp.dtype(out_dtype).itemsize
    min_sub = _min_sublane(x_dtype)

    # Row-tile cap: never exceed the (padded) row count; keep >= 2 row tiles
    # when there is enough work so the "parallel" axis can shard across v7x's
    # two TensorCores.
    cap = _round_up(M, min_sub)
    if M >= 512:
        cap = min(cap, max(256, _round_down(cap // 2, 256)))

    tm_cands = sorted(
        {c for c in (4096, 2048, 1024, 768, 512, 384, 256) if c <= cap} | {cap},
        reverse=True)

    # 1) Fully resident weights (single-buffered, grid-invariant): weight HBM
    #    traffic paid exactly once for the whole kernel.
    for tm in tm_cands:
        if _tile_bytes(tm, Dh, Din, Dout_p, ix, iw, io,
                       wbuf=1, need_acc=False) <= budget:
            return tm, Dh

    # 2) Streamed weights: prioritize a large tm (governs total weight
    #    re-streaming), then the largest hidden chunk th that fits.
    th_cands = [c for c in (2048, 1024, 512, 256, 128)
                if c < Dh and Dh % c == 0] or [Dh]
    for tm in tm_cands:
        for th in th_cands:
            need_acc = th != Dh
            if _tile_bytes(tm, th, Din, Dout_p, ix, iw, io,
                           wbuf=2, need_acc=need_acc) <= budget:
                return tm, th

    # 3) Degenerate fallback: smallest legal tiles.
    return min_sub, th_cands[-1]


def _spec(shape, index_map, mode=None):
    if mode is None:
        return pl.BlockSpec(shape, index_map)
    return pl.BlockSpec(shape, index_map, pipeline_mode=mode)


# ----------------------------------------------------------------------------
# Wrapper
# ----------------------------------------------------------------------------
def mlp_pallas(x, w1, b1, w2, b2, *, tm=None, th=None, approximate_gelu=False):
    """MLP forward: fc2(gelu(fc1(x))); dropout p=0.0 is the identity.

    x: (B, N, Din); w1: (Din, Dh); b1: (Dh,); w2: (Dh, Dout); b2: (Dout,).
    Prefer bf16 weights/activations for best MXU throughput (f32 matmuls run
    as multiple bf16 MXU passes and double streamed HBM bytes); the kernel
    keeps MXU operands in their stored dtype either way.
    """
    B, N, Din = x.shape
    Dh = w1.shape[1]
    Dout = w2.shape[1]
    M = B * N
    out_dtype = x.dtype

    # Lane-dense output: pad Dout to a multiple of 128 so the output block and
    # the accumulator avoid masked partial stores; sliced back afterwards.
    Dout_p = _round_up(Dout, 128)
    if Dout_p != Dout:
        w2 = jnp.pad(w2, ((0, 0), (0, Dout_p - Dout)))
        b2 = jnp.pad(b2, ((0, Dout_p - Dout),))

    budget = _vmem_budget()
    auto_tm, auto_th = _plan_tiles(M, Din, Dh, Dout_p, x.dtype, w1.dtype,
                                   out_dtype, budget)
    tm = auto_tm if tm is None else tm
    th = auto_th if th is None else th
    if Dh % th != 0:
        th = Dh  # fall back to a single hidden chunk
    n_k = Dh // th

    x2 = x.reshape(M, Din)
    Mp = pl.cdiv(M, tm) * tm
    if Mp != M:
        # Ragged token tail: pad with zeros, slice the result back afterwards.
        x2 = jnp.pad(x2, ((0, Mp - M), (0, 0)))
    n_i = Mp // tm

    b1r = b1.reshape(1, Dh)
    b2r = b2.reshape(1, Dout_p)

    ix = jnp.dtype(x.dtype).itemsize
    iw = jnp.dtype(w1.dtype).itemsize
    io = jnp.dtype(out_dtype).itemsize
    weight_bytes = (Din * Dh + Dh * Dout_p + Dh + Dout_p) * iw
    cost = pl.CostEstimate(
        flops=2 * M * Dh * (Din + Dout_p),
        transcendentals=M * Dh,                      # erf / tanh in GELU
        bytes_accessed=(M * Din * ix + M * Dout_p * io
                        + weight_bytes * (1 if n_k == 1 else n_i)),
    )

    resident = pl.Buffered(1)   # grid-invariant operands: single buffer

    if n_k == 1:
        # Fast path: whole hidden dim per step; weights resident in VMEM.
        kernel = functools.partial(_mlp_kernel_resident,
                                   approximate=approximate_gelu)
        grid_spec = pltpu.PrefetchScalarGridSpec(
            num_scalar_prefetch=0,
            grid=(n_i,),
            in_specs=[
                _spec((tm, Din), lambda i: (i, 0)),                 # x row tile
                _spec((Din, Dh), lambda i: (0, 0), resident),       # w1
                _spec((1, Dh), lambda i: (0, 0), resident),         # b1
                _spec((Dh, Dout_p), lambda i: (0, 0), resident),    # w2
                _spec((1, Dout_p), lambda i: (0, 0), resident),     # b2
            ],
            out_specs=pl.BlockSpec((tm, Dout_p), lambda i: (i, 0)),
        )
        dim_sem = ("parallel",)
    else:
        # Streamed path: hidden dim chunked along a trailing reduction axis.
        deep = (n_k >= 3 and _tile_bytes(tm, th, Din, Dout_p, ix, iw, io,
                                         wbuf=3, need_acc=True) <= budget)
        w_mode = pl.Buffered(3) if deep else None
        kernel = functools.partial(_mlp_kernel_streamed,
                                   approximate=approximate_gelu)
        grid_spec = pltpu.PrefetchScalarGridSpec(
            num_scalar_prefetch=0,
            grid=(n_i, n_k),   # rows parallel, hidden-chunk reduction last
            in_specs=[
                _spec((tm, Din), lambda i, k: (i, 0)),              # x row tile
                _spec((Din, th), lambda i, k: (0, k), w_mode),      # w1 chunk
                _spec((1, th), lambda i, k: (0, k), w_mode),        # b1 chunk
                _spec((th, Dout_p), lambda i, k: (k, 0), w_mode),   # w2 chunk
                _spec((1, Dout_p), lambda i, k: (0, 0), resident),  # b2
            ],
            out_specs=pl.BlockSpec((tm, Dout_p), lambda i, k: (i, 0)),
            scratch_shapes=[pltpu.VMEM((tm, Dout_p), jnp.float32)],
        )
        dim_sem = ("parallel", "arbitrary")

    out2 = pl.pallas_call(
        kernel,
        out_shape=jax.ShapeDtypeStruct((Mp, Dout_p), out_dtype),
        grid_spec=grid_spec,
        compiler_params=pltpu.CompilerParams(
            dimension_semantics=dim_sem,
            vmem_limit_bytes=budget,
        ),
        cost_estimate=cost,
    )(x2, w1, b1r, w2, b2r)

    if Mp != M:
        out2 = out2[:M]
    if Dout_p != Dout:
        out2 = out2[:, :Dout]
    return out2.reshape(B, N, Dout)


def mlp_reference(x, w1, b1, w2, b2):
    h = jnp.dot(x, w1) + b1
    h = jax.nn.gelu(h, approximate=False)
    return jnp.dot(h, w2) + b2


if __name__ == "__main__":
    key = jax.random.PRNGKey(0)

    # Case A: resident fast path (auto-planned), Dout not a lane multiple
    # (exercises the Dout padding + slice).
    B, N = 2, 8
    Din, Dh, Dout = 32, 64, 48
    k_x, k_w1, k_b1, k_w2, k_b2 = jax.random.split(key, 5)
    x = jax.random.normal(k_x, (B, N, Din), dtype=jnp.float32)
    w1 = jax.random.normal(k_w1, (Din, Dh), dtype=jnp.float32) * 0.02
    b1 = jax.random.normal(k_b1, (Dh,), dtype=jnp.float32) * 0.01
    w2 = jax.random.normal(k_w2, (Dh, Dout), dtype=jnp.float32) * 0.02
    b2 = jax.random.normal(k_b2, (Dout,), dtype=jnp.float32) * 0.01

    out = jax.block_until_ready(mlp_pallas(x, w1, b1, w2, b2))
    ref = mlp_reference(x, w1, b1, w2, b2)
    assert out.shape == (B, N, Dout)
    assert jnp.allclose(out, ref, atol=2e-5, rtol=2e-5), \
        float(jnp.max(jnp.abs(out - ref)))

    # Case B: streamed path forced via overrides (tm=8, th=128 -> n_k=3,
    # exercises accumulator init / accumulate / fused finalize and the
    # Buffered(3) weight-chunk path), plus a ragged token count (M=5).
    B2, N2 = 1, 5
    Din2, Dh2, Dout2 = 32, 384, 32
    k_x2, k_w12, k_b12, k_w22, k_b22 = jax.random.split(jax.random.PRNGKey(1), 5)
    x_2 = jax.random.normal(k_x2, (B2, N2, Din2), dtype=jnp.float32)
    w1_2 = jax.random.normal(k_w12, (Din2, Dh2), dtype=jnp.float32) * 0.02
    b1_2 = jax.random.normal(k_b12, (Dh2,), dtype=jnp.float32) * 0.01
    w2_2 = jax.random.normal(k_w22, (Dh2, Dout2), dtype=jnp.float32) * 0.02
    b2_2 = jax.random.normal(k_b22, (Dout2,), dtype=jnp.float32) * 0.01

    out2 = jax.block_until_ready(
        mlp_pallas(x_2, w1_2, b1_2, w2_2, b2_2, tm=8, th=128))
    ref2 = mlp_reference(x_2, w1_2, b1_2, w2_2, b2_2)
    assert out2.shape == (B2, N2, Dout2)
    assert jnp.allclose(out2, ref2, atol=2e-5, rtol=2e-5), \
        float(jnp.max(jnp.abs(out2 - ref2)))

    print("KERNEL_OK")
</pallas_src>

<mosaic_0001>
module attributes {stable_mosaic.version = 11 : i64} {
  func.func @_mlp_kernel_resident(%arg0: i32, %arg1: memref<16x32xf32, #tpu.memory_space<vmem>>, %arg2: memref<32x64xf32, #tpu.memory_space<vmem>>, %arg3: memref<1x64xf32, #tpu.memory_space<vmem>>, %arg4: memref<64x128xf32, #tpu.memory_space<vmem>>, %arg5: memref<1x128xf32, #tpu.memory_space<vmem>>, %arg6: memref<16x128xf32, #tpu.memory_space<vmem>>) attributes {dimension_semantics = [#tpu.dimension_semantics<parallel>], iteration_bounds = array<i64: 1>, scalar_prefetch = 0 : i64, scratch_operands = 0 : i64, tpu.core_type = #tpu.core_type<tc>, window_params = [{transform_indices = @transform_0, window_bounds = array<i64: 16, 32>}, {pipeline_mode = #tpu.pipeline_mode<synchronous>, transform_indices = @transform_1, window_bounds = array<i64: 32, 64>}, {pipeline_mode = #tpu.pipeline_mode<synchronous>, transform_indices = @transform_2, window_bounds = array<i64: 1, 64>}, {pipeline_mode = #tpu.pipeline_mode<synchronous>, transform_indices = @transform_3, window_bounds = array<i64: 64, 128>}, {pipeline_mode = #tpu.pipeline_mode<synchronous>, transform_indices = @transform_4, window_bounds = array<i64: 1, 128>}, {transform_indices = @transform_5, window_bounds = array<i64: 16, 128>}]} {
    %c0 = arith.constant 0 : index
    %c0_0 = arith.constant 0 : index
    %0 = vector.load %arg1[%c0, %c0_0] : memref<16x32xf32, #tpu.memory_space<vmem>>, vector<16x32xf32>
    %c0_1 = arith.constant 0 : index
    %c0_2 = arith.constant 0 : index
    %1 = vector.load %arg2[%c0_1, %c0_2] : memref<32x64xf32, #tpu.memory_space<vmem>>, vector<32x64xf32>
    %cst = arith.constant dense<0.000000e+00> : vector<16x64xf32>
    %2 = tpu.matmul %0, %1, %cst {dimension_numbers = #tpu.dot_dimension_numbers<[1], [0], [0], [1], [0, 0, 1, 1], [], []>} : vector<16x32xf32>, vector<32x64xf32>, vector<16x64xf32> -> vector<16x64xf32>
    %c0_3 = arith.constant 0 : index
    %c0_4 = arith.constant 0 : index
    %3 = vector.load %arg3[%c0_3, %c0_4] : memref<1x64xf32, #tpu.memory_space<vmem>>, vector<1x64xf32>
    %4 = vector.broadcast %3 : vector<1x64xf32> to vector<16x64xf32>
    %5 = arith.addf %2, %4 : vector<16x64xf32>
    %cst_5 = arith.constant 5.000000e-01 : f32
    %6 = vector.broadcast %cst_5 : f32 to vector<16x64xf32>
    %7 = arith.mulf %6, %5 : vector<16x64xf32>
    %cst_6 = arith.constant 0.707106769 : f32
    %8 = vector.broadcast %cst_6 : f32 to vector<16x64xf32>
    %9 = arith.mulf %5, %8 : vector<16x64xf32>
    %10 = math.erf %9 : vector<16x64xf32>
    %cst_7 = arith.constant 1.000000e+00 : f32
    %11 = vector.broadcast %cst_7 : f32 to vector<16x64xf32>
    %12 = arith.addf %11, %10 : vector<16x64xf32>
    %13 = arith.mulf %7, %12 : vector<16x64xf32>
    %c0_8 = arith.constant 0 : index
    %c0_9 = arith.constant 0 : index
    %14 = vector.load %arg4[%c0_8, %c0_9] : memref<64x128xf32, #tpu.memory_space<vmem>>, vector<64x128xf32>
    %cst_10 = arith.constant dense<0.000000e+00> : vector<16x128xf32>
    %15 = tpu.matmul %13, %14, %cst_10 {dimension_numbers = #tpu.dot_dimension_numbers<[1], [0], [0], [1], [0, 0, 1, 1], [], []>} : vector<16x64xf32>, vector<64x128xf32>, vector<16x128xf32> -> vector<16x128xf32>
    %c0_11 = arith.constant 0 : index
    %c0_12 = arith.constant 0 : index
    %16 = vector.load %arg5[%c0_11, %c0_12] : memref<1x128xf32, #tpu.memory_space<vmem>>, vector<1x128xf32>
    %17 = vector.broadcast %16 : vector<1x128xf32> to vector<16x128xf32>
    %18 = arith.addf %15, %17 : vector<16x128xf32>
    %c0_13 = arith.constant 0 : index
    %c0_14 = arith.constant 0 : index
    %19 = vector.load %arg6[%c0_13, %c0_14] : memref<16x128xf32, #tpu.memory_space<vmem>>, vector<16x128xf32>
    tpu.vector_store %arg6[%c0_13, %c0_14], %18 {strides = array<i32>} : memref<16x128xf32, #tpu.memory_space<vmem>>, vector<16x128xf32>,
    return
  }
  func.func @transform_0(%arg0: i32) -> (i32, i32) {
    %c0_i32 = arith.constant 0 : i32
    %c0_i32_0 = arith.constant 0 : i32
    return %arg0, %c0_i32 : i32, i32
  }
  func.func @transform_1(%arg0: i32) -> (i32, i32) {
    %c0_i32 = arith.constant 0 : i32
    %c0_i32_0 = arith.constant 0 : i32
    %c0_i32_1 = arith.constant 0 : i32
    return %c0_i32, %c0_i32_0 : i32, i32
  }
  func.func @transform_2(%arg0: i32) -> (i32, i32) {
    %c0_i32 = arith.constant 0 : i32
    %c0_i32_0 = arith.constant 0 : i32
    %c0_i32_1 = arith.constant 0 : i32
    return %c0_i32, %c0_i32_0 : i32, i32
  }
  func.func @transform_3(%arg0: i32) -> (i32, i32) {
    %c0_i32 = arith.constant 0 : i32
    %c0_i32_0 = arith.constant 0 : i32
    %c0_i32_1 = arith.constant 0 : i32
    return %c0_i32, %c0_i32_0 : i32, i32
  }
  func.func @transform_4(%arg0: i32) -> (i32, i32) {
    %c0_i32 = arith.constant 0 : i32
    %c0_i32_0 = arith.constant 0 : i32
    %c0_i32_1 = arith.constant 0 : i32
    return %c0_i32, %c0_i32_0 : i32, i32
  }
  func.func @transform_5(%arg0: i32) -> (i32, i32) {
    %c0_i32 = arith.constant 0 : i32
    %c0_i32_0 = arith.constant 0 : i32
    return %arg0, %c0_i32 : i32, i32
  }
}

</mosaic_0001>

<llo_original>
// kernel: tpu_custom_call.1
$region0: #{tpu_custom_call.1}
  #allocation0 [shape = 'u32[]', space=smem, size = 0x4, offset = 0x4, fixed_abs, tag = 'smem constant byte address 0x4 - core index']
  #allocation1 [shape = 'u32[144,128]{1,0:T(1,128)}', space=vmem, size = 0x12000, scoped, tag = 'internal scratch']
  %s0 = inlined_call_operand.hbm [shape: f32[16,32], index: 0, kind: input, shape index: {}]
  %s1 = inlined_call_operand.hbm [shape: f32[32,64], index: 1, kind: input, shape index: {}]
  %s2 = inlined_call_operand.vmem [shape: f32[1,64], index: 2, kind: input, shape index: {}]
  %s3 = inlined_call_operand.hbm [shape: f32[64,128], index: 3, kind: input, shape index: {}]
  %s4 = inlined_call_operand.vmem [shape: f32[1,128], index: 4, kind: input, shape index: {}]
  %s5 = inlined_call_operand.hbm [shape: f32[16,128], index: 5, kind: output, shape index: {}]
  %s6 = sld [smem:[#allocation0]]
  $region42: #{tpu_custom_call.1} parent=0
    _
  %s8 = ssub.s32 1, %s6
  %s9 = scalar_select 0, %s8, %s6
  $region1: #{tpu_custom_call.1} parent=0
    #allocation2 [shape = 'u8[8192]{0}', space=vmem, size = 0x2000, scoped, tag = 'input window, operand 0, single buffered']
    #allocation3 [shape = 's32[1]{0}', space=sflag, size = 0x4, scoped, tag = 'scoped memory for tpu_custom_call.1']
    #allocation4 [shape = 's32[1]{0}', space=sflag, size = 0x4, scoped, tag = 'scoped memory for tpu_custom_call.1']
    #allocation5 [shape = 'u8[16384]{0}', space=vmem, size = 0x4000, scoped, tag = 'input window, operand 1, single buffered']
    #allocation6 [shape = 's32[1]{0}', space=sflag, size = 0x4, scoped, tag = 'scoped memory for tpu_custom_call.1']
    #allocation7 [shape = 'u8[32768]{0}', space=vmem, size = 0x8000, scoped, tag = 'input window, operand 3, single buffered']
    #allocation8 [shape = 'u8[8192]{0}', space=vmem, size = 0x2000, scoped, tag = 'output window, operand 0, single buffered']
    %10 = vsyncpa [#allocation3], 0
    %11 = vsyncpa [#allocation6], 0
    %12 = vsyncpa [#allocation4], 0
    // Predicated region
    $region2: #{tpu_custom_call.1} parent=1 // pred_check
      _
    $region3: #{tpu_custom_call.1} parent=1 // pred_check_branch
      %14 = sbr.rel (0) target = $region5
    $region4: #{tpu_custom_call.1} parent=1 // pred_region
      %s16 = ssub.s32 256, 256
      %17 = vsyncadd [#allocation3], %s16
      %s18 = sshll.u32 [#allocation2], 4
      %s19 = int_to_ptr.vmem [resolvable:$true] %s18
      %24 = dma.hbm_to_vmem [thread:$0]  %s0, 256, %s19, [#allocation3], 128, 128, 8
    $region5: #{tpu_custom_call.1} parent=1 // pred_fallthru
      _
    // Predicated region
    $region6: #{tpu_custom_call.1} parent=1 // pred_check
      _
    $region7: #{tpu_custom_call.1} parent=1 // pred_check_branch
      %26 = sbr.rel (0) target = $region9
    $region8: #{tpu_custom_call.1} parent=1 // pred_region
      %s28 = ssub.s32 512, 512
      %29 = vsyncadd [#allocation6], %s28
      %s30 = sshll.u32 [#allocation5], 4
      %s31 = int_to_ptr.vmem [resolvable:$true] %s30
      %36 = dma.hbm_to_vmem [thread:$0]  %s1, 512, %s31, [#allocation6], 128, 128, 8
    $region9: #{tpu_custom_call.1} parent=1 // pred_fallthru
      _
    // Predicated region
    $region10: #{tpu_custom_call.1} parent=1 // pred_check
      _
    $region11: #{tpu_custom_call.1} parent=1 // pred_check_branch
      %38 = sbr.rel (0) target = $region13
    $region12: #{tpu_custom_call.1} parent=1 // pred_region
      _
    $region13: #{tpu_custom_call.1} parent=1 // pred_fallthru
      _
    // Predicated region
    $region14: #{tpu_custom_call.1} parent=1 // pred_check
      _
    $region15: #{tpu_custom_call.1} parent=1 // pred_check_branch
      %40 = sbr.rel (0) target = $region17
    $region16: #{tpu_custom_call.1} parent=1 // pred_region
      %s42 = ssub.s32 1024, 1024
      %43 = vsyncadd [#allocation6], %s42
      %s44 = sshll.u32 [#allocation7], 4
      %s45 = int_to_ptr.vmem [resolvable:$true] %s44
      %50 = dma.hbm_to_vmem [thread:$0]  %s3, 1024, %s45, [#allocation6], 128, 128, 8
    $region17: #{tpu_custom_call.1} parent=1 // pred_fallthru
      _
    // Predicated region
    $region18: #{tpu_custom_call.1} parent=1 // pred_check
      _
    $region19: #{tpu_custom_call.1} parent=1 // pred_check_branch
      %52 = sbr.rel (0) target = $region21
    $region20: #{tpu_custom_call.1} parent=1 // pred_region
      _
    $region21: #{tpu_custom_call.1} parent=1 // pred_fallthru
      _
    // Predicated region
    $region22: #{tpu_custom_call.1} parent=1 // pred_check
      _
    $region23: #{tpu_custom_call.1} parent=1 // pred_check_branch
      %54 = sbr.rel (0) target = $region25
    $region24: #{tpu_custom_call.1} parent=1 // pred_region
      %55 = dma.done [#allocation3], 256
    $region25: #{tpu_custom_call.1} parent=1 // pred_fallthru
      _
    // Predicated region
    $region26: #{tpu_custom_call.1} parent=1 // pred_check
      _
    $region27: #{tpu_custom_call.1} parent=1 // pred_check_branch
      %57 = sbr.rel (0) target = $region29
    $region28: #{tpu_custom_call.1} parent=1 // pred_region
      %58 = dma.done [#allocation6], 512
    $region29: #{tpu_custom_call.1} parent=1 // pred_fallthru
      _
    // Predicated region
    $region30: #{tpu_custom_call.1} parent=1 // pred_check
      _
    $region31: #{tpu_custom_call.1} parent=1 // pred_check_branch
      %60 = sbr.rel (0) target = $region33
    $region32: #{tpu_custom_call.1} parent=1 // pred_region
      %61 = dma.done [#allocation6], 1024
    $region33: #{tpu_custom_call.1} parent=1 // pred_fallthru
      _
    %v62 = vld [vmem:[#allocation2] sm:$0xff]
    %v63 = vld [vmem:[#allocation2 + $0x8] sm:$0xff]
    %v64 = vld [vmem:[#allocation5] sm:$0xff]
    %v65 = vld [vmem:[#allocation5 + $0x8] sm:$0xff]
    %v66 = vld [vmem:[#allocation5 + $0x10] sm:$0xff]
    %v67 = vld [vmem:[#allocation5 + $0x18] sm:$0xff]
    %v68 = vld [vmem:[%s2] sm:$0x1]
    %v70 = vlaneseq
    %v71 = vshrl.u32 %v70, 7
    %v72 = vsub.s32 0, %v71
    %v73 = vrot.slane %v68, %v72
    %vm75 = vcmask 261120
    %v77 = vsel %vm75, %v62, 0
    %v80 = vsel %vm75, %v63, 0
    %82 = vmatprep.subr.mxu0 0.0
    %83 = vmatpush1.msra.mxu0 %v64
    %84 = vmatprep.subr.mxu0 0.0
    %85 = vmatpush1.msra.mxu0 %v65
    %86 = vmatprep.subr.mxu0 0.0
    %87 = vmatpush1.msra.mxu0 %v66
    %88 = vmatprep.subr.mxu0 0.0
    %89 = vmatpush1.msra.mxu0 %v67
    %90 = vmatprep.subr.mxu0 0.0
    %91 = vmatpush1.msra.mxu0 0.0
    %92 = vmatprep.subr.mxu0 0.0
    %93 = vmatpush1.msra.mxu0 0.0
    %94 = vmatprep.subr.mxu0 0.0
    %95 = vmatpush1.msra.mxu0 0.0
    %96 = vmatprep.subr.mxu0 0.0
    %97 = vmatpush1.msra.mxu0 0.0
    %98 = vmatprep.subr.mxu0 0.0
    %99 = vmatpush1.msra.mxu0 0.0
    %100 = vmatprep.subr.mxu0 0.0
    %101 = vmatpush1.msra.mxu0 0.0
    %102 = vmatprep.subr.mxu0 0.0
    %103 = vmatpush1.msra.mxu0 0.0
    %104 = vmatprep.subr.mxu0 0.0
    %105 = vmatpush1.msra.mxu0 0.0
    %106 = vmatprep.subr.mxu0 0.0
    %107 = vmatpush1.msra.mxu0 0.0
    %108 = vmatprep.subr.mxu0 0.0
    %109 = vmatpush1.msra.mxu0 0.0
    %110 = vmatprep.subr.mxu0 0.0
    %111 = vmatpush1.msra.mxu0 0.0
    %112 = vmatprep.subr.mxu0 0.0
    %113 = vmatpush1.msra.mxu0 0.0
    %114 = vmatprep.subr.mxu0 0.0
    %115 = vmatpush1.msra.mxu0 0.0
    %116 = vmatprep.subr.mxu0 0.0
    %117 = vmatpush1.msra.mxu0 0.0
    %118 = vmatprep.subr.mxu0 0.0
    %119 = vmatpush1.msra.mxu0 0.0
    %120 = vmatprep.subr.mxu0 0.0
    %121 = vmatpush1.msra.mxu0 0.0
    %122 = vmatprep.subr.mxu0 0.0
    %123 = vmatpush1.msra.mxu0 0.0
    %124 = vmatprep.subr.mxu0 0.0
    %125 = vmatpush1.msra.mxu0 0.0
    %126 = vmatprep.subr.mxu0 0.0
    %127 = vmatpush1.msra.mxu0 0.0
    %128 = vmatprep.subr.mxu0 0.0
    %129 = vmatpush1.msra.mxu0 0.0
    %130 = vmatprep.subr.mxu0 0.0
    %131 = vmatpush1.msra.mxu0 0.0
    %132 = vmatprep.subr.mxu0 0.0
    %133 = vmatpush1.msra.mxu0 0.0
    %134 = vmatprep.subr.mxu0 0.0
    %135 = vmatpush1.msra.mxu0 0.0
    %136 = vmatprep.subr.mxu0 0.0
    %137 = vmatpush1.msra.mxu0 0.0
    %138 = vmatprep.subr.mxu0 0.0
    %139 = vmatpush1.msra.mxu0 0.0
    %140 = vmatprep.subr.mxu0 0.0
    %141 = vmatpush1.msra.mxu0 0.0
    %142 = vmatprep.subr.mxu0 0.0
    %143 = vmatpush1.msra.mxu0 0.0
    %144 = vmatprep.subr.mxu0 0.0
    %145 = vmatpush1.msra.mxu0 0.0
    %146 = vmatprep.mubr.f32.mxu0 0.0
    %147 = vmatmul.mubr.f32.gmra.mrb[0].mxu0 %v77
    %v148 = vpop.f32.mrb[0].mxu0
    %v149 = vadd.f32 %v73, %v148
    %v150 = vpop.f32.mrb[0].mxu0
    %151 = vmatprep.mubr.f32.mxu0 0.0
    %152 = vmatmul.mubr.f32.gmra.mrb[0].mxu0 %v80
    %v153 = vpop.f32.mrb[0].mxu0
    %v154 = vadd.f32 %v73, %v153
    %v155 = vpop.f32.mrb[0].mxu0
    %156 = vdwg.mxu0
    %v157 = vmul.f32 %v149, 0.5
    %v158 = vmul.f32 %v154, 0.5
    %v159 = vmul.f32 %v149, 0.70710677
    %v160 = vmul.f32 %v154, 0.70710677
    %v161 = verf.f32.pop %v159
    %v162 = verf.f32.pop %v160
    %v163 = vadd.f32 %v161, 1.0
    %v164 = vadd.f32 %v162, 1.0
    %v165 = vmul.f32 %v157, %v163
    %v166 = vmul.f32 %v158, %v164
    %v167 = vld [vmem:[#allocation7] sm:$0xff]
    %v168 = vld [vmem:[#allocation7 + $0x8] sm:$0xff]
    %v169 = vld [vmem:[#allocation7 + $0x10] sm:$0xff]
    %v170 = vld [vmem:[#allocation7 + $0x18] sm:$0xff]
    %v171 = vld [vmem:[#allocation7 + $0x20] sm:$0xff]
    %v172 = vld [vmem:[#allocation7 + $0x28] sm:$0xff]
    %v173 = vld [vmem:[#allocation7 + $0x30] sm:$0xff]
    %v174 = vld [vmem:[#allocation7 + $0x38] sm:$0xff]
    %v175 = vld [vmem:[%s4] sm:$0x1]
    %v177 = vlaneseq
    %v178 = vshrl.u32 %v177, 7
    %v179 = vsub.s32 0, %v178
    %v180 = vrot.slane %v175, %v179
    %vm182 = vcmask 523264
    %v184 = vsel %vm182, %v165, 0
    %v187 = vsel %vm182, %v166, 0
    %189 = vmatprep.subr.mxu0 0.0
    %190 = vmatpush1.msra.mxu0 %v167
    %191 = vmatprep.subr.mxu0 0.0
    %192 = vmatpush1.msra.mxu0 %v168
    %193 = vmatprep.subr.mxu0 0.0
    %194 = vmatpush1.msra.mxu0 %v169
    %195 = vmatprep.subr.mxu0 0.0
    %196 = vmatpush1.msra.mxu0 %v170
    %197 = vmatprep.subr.mxu0 0.0
    %198 = vmatpush1.msra.mxu0 %v171
    %199 = vmatprep.subr.mxu0 0.0
    %200 = vmatpush1.msra.mxu0 %v172
    %201 = vmatprep.subr.mxu0 0.0
    %202 = vmatpush1.msra.mxu0 %v173
    %203 = vmatprep.subr.mxu0 0.0
    %204 = vmatpush1.msra.mxu0 %v174
    %205 = vmatprep.subr.mxu0 0.0
    %206 = vmatpush1.msra.mxu0 0.0
    %207 = vmatprep.subr.mxu0 0.0
    %208 = vmatpush1.msra.mxu0 0.0
    %209 = vmatprep.subr.mxu0 0.0
    %210 = vmatpush1.msra.mxu0 0.0
    %211 = vmatprep.subr.mxu0 0.0
    %212 = vmatpush1.msra.mxu0 0.0
    %213 = vmatprep.subr.mxu0 0.0
    %214 = vmatpush1.msra.mxu0 0.0
    %215 = vmatprep.subr.mxu0 0.0
    %216 = vmatpush1.msra.mxu0 0.0
    %217 = vmatprep.subr.mxu0 0.0
    %218 = vmatpush1.msra.mxu0 0.0
    %219 = vmatprep.subr.mxu0 0.0
    %220 = vmatpush1.msra.mxu0 0.0
    %221 = vmatprep.subr.mxu0 0.0
    %222 = vmatpush1.msra.mxu0 0.0
    %223 = vmatprep.subr.mxu0 0.0
    %224 = vmatpush1.msra.mxu0 0.0
    %225 = vmatprep.subr.mxu0 0.0
    %226 = vmatpush1.msra.mxu0 0.0
    %227 = vmatprep.subr.mxu0 0.0
    %228 = vmatpush1.msra.mxu0 0.0
    %229 = vmatprep.subr.mxu0 0.0
    %230 = vmatpush1.msra.mxu0 0.0
    %231 = vmatprep.subr.mxu0 0.0
    %232 = vmatpush1.msra.mxu0 0.0
    %233 = vmatprep.subr.mxu0 0.0
    %234 = vmatpush1.msra.mxu0 0.0
    %235 = vmatprep.subr.mxu0 0.0
    %236 = vmatpush1.msra.mxu0 0.0
    %237 = vmatprep.subr.mxu0 0.0
    %238 = vmatpush1.msra.mxu0 0.0
    %239 = vmatprep.subr.mxu0 0.0
    %240 = vmatpush1.msra.mxu0 0.0
    %241 = vmatprep.subr.mxu0 0.0
    %242 = vmatpush1.msra.mxu0 0.0
    %243 = vmatprep.subr.mxu0 0.0
    %244 = vmatpush1.msra.mxu0 0.0
    %245 = vmatprep.subr.mxu0 0.0
    %246 = vmatpush1.msra.mxu0 0.0
    %247 = vmatprep.subr.mxu0 0.0
    %248 = vmatpush1.msra.mxu0 0.0
    %249 = vmatprep.subr.mxu0 0.0
    %250 = vmatpush1.msra.mxu0 0.0
    %251 = vmatprep.subr.mxu0 0.0
    %252 = vmatpush1.msra.mxu0 0.0
    %253 = vmatprep.mubr.f32.mxu0 0.0
    %254 = vmatmul.mubr.f32.gmra.mrb[0].mxu0 %v184
    %v255 = vpop.f32.mrb[0].mxu0
    %v256 = vadd.f32 %v180, %v255
    %v257 = vpop.f32.mrb[0].mxu0
    %258 = vmatprep.mubr.f32.mxu0 0.0
    %259 = vmatmul.mubr.f32.gmra.mrb[0].mxu0 %v187
    %v260 = vpop.f32.mrb[0].mxu0
    %v261 = vadd.f32 %v180, %v260
    %v262 = vpop.f32.mrb[0].mxu0
    %263 = vdwg.mxu0
    %264 = vst [vmem:[#allocation8] sm:$0xff] %v256
    %265 = vst [vmem:[#allocation8 + $0x8] sm:$0xff] %v261
    // Predicated region
    $region34: #{tpu_custom_call.1} parent=1 // pred_check
      _
    $region35: #{tpu_custom_call.1} parent=1 // pred_check_branch
      %267 = sbr.rel (0) target = $region37
    $region36: #{tpu_custom_call.1} parent=1 // pred_region
      %s269 = ssub.s32 256, 256
      %270 = vsyncadd [#allocation4], %s269
      %s271 = sshll.u32 [#allocation8], 4
      %s272 = int_to_ptr.vmem [resolvable:$true] %s271
      %277 = dma.vmem_to_hbm [thread:$0]  %s272, 256, %s5, [#allocation4], 128, 128, 8
    $region37: #{tpu_custom_call.1} parent=1 // pred_fallthru
      _
    // Predicated region
    $region38: #{tpu_custom_call.1} parent=1 // pred_check
      _
    $region39: #{tpu_custom_call.1} parent=1 // pred_check_branch
      %279 = sbr.rel (0) target = $region41
    $region40: #{tpu_custom_call.1} parent=1 // pred_region
      %280 = dma.done [#allocation4], 256
    $region41: #{tpu_custom_call.1} parent=1 // pred_fallthru
      _
    %281 = vsyncpa [#allocation3], 1
    %282 = vsyncpa [#allocation6], 1
    %283 = vsyncpa [#allocation4], 1

</llo_original>
